<compile_context>
chip_gen: v7x
topology: tpu7x:2x2x1
jax: 0.10.0
libtpu: 0.0.40
codegen_flags: <defaults>
</compile_context>

<pallas_src>
import functools

import jax
import jax.numpy as jnp
from jax import lax
from jax.experimental import pallas as pl
from jax.experimental.pallas import tpu as pltpu


def _triplet_kernel(x_rows_ref, x_all_ref, sq_row_ref, sq_col_ref,
                    t_row_ref, t_col_ref, o_ref, *, margin, n_valid, tm):
    i = pl.program_id(0)

    # (-2 * x_rows) @ x_all^T on the MXU, f32 accumulate.  Folding the -2 into the
    # (tm, d) operand is O(tm*d) instead of O(tm*n) on the result.
    neg2gram = lax.dot_general(
        x_rows_ref[...] * jnp.float32(-2.0), x_all_ref[...],
        (((1,), (1,)), ((), ())),
        preferred_element_type=jnp.float32)                    # (tm, n_pad)

    # dist2[i, j] = ||x_i||^2 + ||x_j||^2 - 2 <x_i, x_j>
    dist2 = sq_row_ref[...] + sq_col_ref[...] + neg2gram        # (tm, n_pad)

    t_r = t_row_ref[...]                                        # (tm, 1) int32
    t_c = t_col_ref[...]                                        # (1, n_pad) int32
    same = t_r == t_c                                           # (tm, n_pad) bool

    # Validity masks: exclude zero-padded rows/columns.
    col_idx = lax.broadcasted_iota(jnp.int32, dist2.shape, 1)
    col_valid = col_idx < n_valid
    pos = jnp.logical_and(same, col_valid)
    neg = jnp.logical_and(jnp.logical_not(same), col_valid)

    # Fused masking: push non-candidates far away instead of materializing two
    # where()-selected copies, then mine on squared distances.
    BIG = jnp.float32(1e9)
    pos_f = pos.astype(jnp.float32)
    neg_f = neg.astype(jnp.float32)
    ap2 = jnp.max(dist2 - (1.0 - pos_f) * BIG, axis=1, keepdims=True)  # (tm, 1)
    an2 = jnp.min(dist2 + (1.0 - neg_f) * BIG, axis=1, keepdims=True)  # (tm, 1)

    # Deferred sqrt on the mined values only (2*tm sqrts instead of tm*n_pad).
    dist_ap = jnp.sqrt(jnp.maximum(ap2, 1e-12))
    dist_an = jnp.sqrt(jnp.maximum(an2, 1e-12))

    # MarginRankingLoss with y = 1: max(0, dist_ap - dist_an + margin), zeroed for
    # padded query rows.
    row_idx = i * tm + lax.broadcasted_iota(jnp.int32, (tm, 1), 0)
    row_valid = (row_idx < n_valid).astype(jnp.float32)
    o_ref[...] = jnp.maximum(dist_ap - dist_an + margin, 0.0) * row_valid


def triplet_loss(inputs, targets, margin=0.3):
    """inputs: (n, d) float, targets: (n,) int -> scalar float32 loss."""
    n, d = inputs.shape
    x = inputs.astype(jnp.float32)

    # MXU/lane-friendly row tile; pad the batch so n_pad is a multiple of tm
    # (and therefore of 128 -> lane-dense (tm, n_pad) distance tiles).
    tm = 256 if n > 128 else 128
    n_pad = ((n + tm - 1) // tm) * tm
    pad = n_pad - n

    x_p = jnp.pad(x, ((0, pad), (0, 0)))
    t_p = jnp.pad(targets.astype(jnp.int32), ((0, pad),), constant_values=-1)

    # Precompute squared row norms once; provide both layouts so the kernel never
    # transposes (n,1) arrays per grid step.
    sq = jnp.sum(x_p * x_p, axis=1)
    sq_row = sq.reshape(n_pad, 1)
    sq_col = sq.reshape(1, n_pad)
    t_row = t_p.reshape(n_pad, 1)
    t_col = t_p.reshape(1, n_pad)

    grid = (n_pad // tm,)
    per_row = pl.pallas_call(
        functools.partial(_triplet_kernel, margin=float(margin), n_valid=n, tm=tm),
        out_shape=jax.ShapeDtypeStruct((n_pad, 1), jnp.float32),
        grid_spec=pltpu.PrefetchScalarGridSpec(
            num_scalar_prefetch=0,
            grid=grid,
            in_specs=[
                pl.BlockSpec((tm, d), lambda i: (i, 0)),       # x row tile
                pl.BlockSpec((n_pad, d), lambda i: (0, 0)),    # full x (resident)
                pl.BlockSpec((tm, 1), lambda i: (i, 0)),       # sq, row layout
                pl.BlockSpec((1, n_pad), lambda i: (0, 0)),    # sq, col layout
                pl.BlockSpec((tm, 1), lambda i: (i, 0)),       # targets, row layout
                pl.BlockSpec((1, n_pad), lambda i: (0, 0)),    # targets, col layout
            ],
            out_specs=pl.BlockSpec((tm, 1), lambda i: (i, 0)),
        ),
        compiler_params=pltpu.CompilerParams(
            dimension_semantics=("parallel",),
            vmem_limit_bytes=64 * 1024 * 1024,
        ),
    )(x_p, x_p, sq_row, sq_col, t_row, t_col)

    # Padded rows contribute exactly 0; divide by the true batch size.
    return jnp.sum(per_row) / jnp.float32(n)


def _triplet_loss_ref(inputs, targets, margin=0.3):
    """Pure-JAX reference matching the PyTorch module."""
    x = inputs.astype(jnp.float32)
    sq = jnp.sum(x * x, axis=1, keepdims=True)
    dist = jnp.sqrt(jnp.maximum(sq + sq.T - 2.0 * (x @ x.T), 1e-12))
    mask = targets[:, None] == targets[None, :]
    dist_ap = jnp.max(jnp.where(mask, dist, -jnp.inf), axis=1)
    dist_an = jnp.min(jnp.where(mask, jnp.inf, dist), axis=1)
    return jnp.mean(jnp.maximum(dist_ap - dist_an + margin, 0.0))


if __name__ == "__main__":
    key = jax.random.PRNGKey(0)
    n, d = 8, 32
    inputs = jax.random.normal(key, (n, d), dtype=jnp.float32)
    # Two samples per class, 4 classes -> every row has at least one positive
    # (itself) and several negatives.
    targets = jnp.array([0, 0, 1, 1, 2, 2, 3, 3], dtype=jnp.int32)

    out = triplet_loss(inputs, targets, margin=0.3)
    out = jax.block_until_ready(out)

    ref = _triplet_loss_ref(inputs, targets, margin=0.3)
    assert jnp.allclose(out, ref, rtol=1e-5, atol=1e-5), (out, ref)
    print("KERNEL_OK")
</pallas_src>

<mosaic_0001>
module attributes {stable_mosaic.version = 11 : i64} {
  func.func @_triplet_kernel(%arg0: i32, %arg1: memref<128x32xf32, #tpu.memory_space<vmem>>, %arg2: memref<128x32xf32, #tpu.memory_space<vmem>>, %arg3: memref<128x1xf32, #tpu.memory_space<vmem>>, %arg4: memref<1x128xf32, #tpu.memory_space<vmem>>, %arg5: memref<128x1xi32, #tpu.memory_space<vmem>>, %arg6: memref<1x128xi32, #tpu.memory_space<vmem>>, %arg7: memref<128x1xf32, #tpu.memory_space<vmem>>) attributes {dimension_semantics = [#tpu.dimension_semantics<parallel>], iteration_bounds = array<i64: 1>, scalar_prefetch = 0 : i64, scratch_operands = 0 : i64, tpu.core_type = #tpu.core_type<tc>, window_params = [{transform_indices = @transform_0, window_bounds = array<i64: 128, 32>}, {pipeline_mode = #tpu.pipeline_mode<synchronous>, transform_indices = @transform_1, window_bounds = array<i64: 128, 32>}, {transform_indices = @transform_2, window_bounds = array<i64: 128, 1>}, {pipeline_mode = #tpu.pipeline_mode<synchronous>, transform_indices = @transform_3, window_bounds = array<i64: 1, 128>}, {transform_indices = @transform_4, window_bounds = array<i64: 128, 1>}, {pipeline_mode = #tpu.pipeline_mode<synchronous>, transform_indices = @transform_5, window_bounds = array<i64: 1, 128>}, {transform_indices = @transform_6, window_bounds = array<i64: 128, 1>}]} {
    %c0 = arith.constant 0 : index
    %c0_0 = arith.constant 0 : index
    %0 = vector.load %arg1[%c0, %c0_0] : memref<128x32xf32, #tpu.memory_space<vmem>>, vector<128x32xf32>
    %cst = arith.constant -2.000000e+00 : f32
    %1 = vector.broadcast %cst : f32 to vector<128x32xf32>
    %2 = arith.mulf %0, %1 : vector<128x32xf32>
    %c0_1 = arith.constant 0 : index
    %c0_2 = arith.constant 0 : index
    %3 = vector.load %arg2[%c0_1, %c0_2] : memref<128x32xf32, #tpu.memory_space<vmem>>, vector<128x32xf32>
    %cst_3 = arith.constant dense<0.000000e+00> : vector<128x128xf32>
    %4 = tpu.matmul %2, %3, %cst_3 {dimension_numbers = #tpu.dot_dimension_numbers<[1], [1], [0], [0], [0, 0, 1, 0], [], []>} : vector<128x32xf32>, vector<128x32xf32>, vector<128x128xf32> -> vector<128x128xf32>
    %c0_4 = arith.constant 0 : index
    %c0_5 = arith.constant 0 : index
    %5 = vector.load %arg3[%c0_4, %c0_5] : memref<128x1xf32, #tpu.memory_space<vmem>>, vector<128x1xf32>
    %c0_6 = arith.constant 0 : index
    %c0_7 = arith.constant 0 : index
    %6 = vector.load %arg4[%c0_6, %c0_7] : memref<1x128xf32, #tpu.memory_space<vmem>>, vector<1x128xf32>
    %7 = vector.broadcast %5 : vector<128x1xf32> to vector<128x128xf32>
    %8 = vector.broadcast %6 : vector<1x128xf32> to vector<128x128xf32>
    %9 = arith.addf %7, %8 : vector<128x128xf32>
    %10 = arith.addf %9, %4 : vector<128x128xf32>
    %c0_8 = arith.constant 0 : index
    %c0_9 = arith.constant 0 : index
    %11 = vector.load %arg5[%c0_8, %c0_9] : memref<128x1xi32, #tpu.memory_space<vmem>>, vector<128x1xi32>
    %c0_10 = arith.constant 0 : index
    %c0_11 = arith.constant 0 : index
    %12 = vector.load %arg6[%c0_10, %c0_11] : memref<1x128xi32, #tpu.memory_space<vmem>>, vector<1x128xi32>
    %13 = vector.broadcast %11 : vector<128x1xi32> to vector<128x128xi32>
    %14 = vector.broadcast %12 : vector<1x128xi32> to vector<128x128xi32>
    %15 = arith.cmpi eq, %13, %14 : vector<128x128xi32>
    %16 = tpu.iota {dimensions = array<i32: 1>} : vector<128x128xi32>
    %c8_i32 = arith.constant 8 : i32
    %17 = vector.broadcast %c8_i32 : i32 to vector<128x128xi32>
    %18 = arith.cmpi slt, %16, %17 : vector<128x128xi32>
    %19 = arith.andi %15, %18 : vector<128x128xi1>
    %cst_12 = arith.constant dense<true> : vector<128x128xi1>
    %20 = arith.xori %15, %cst_12 : vector<128x128xi1>
    %21 = arith.andi %20, %18 : vector<128x128xi1>
    %22 = arith.extui %19 : vector<128x128xi1> to vector<128x128xi32>
    %23 = arith.sitofp %22 : vector<128x128xi32> to vector<128x128xf32>
    %24 = arith.extui %21 : vector<128x128xi1> to vector<128x128xi32>
    %25 = arith.sitofp %24 : vector<128x128xi32> to vector<128x128xf32>
    %cst_13 = arith.constant 1.000000e+00 : f32
    %26 = vector.broadcast %cst_13 : f32 to vector<128x128xf32>
    %27 = arith.subf %26, %23 : vector<128x128xf32>
    %cst_14 = arith.constant 1.000000e+09 : f32
    %28 = vector.broadcast %cst_14 : f32 to vector<128x128xf32>
    %29 = arith.mulf %27, %28 : vector<128x128xf32>
    %30 = arith.subf %10, %29 : vector<128x128xf32>
    %cst_15 = arith.constant dense<0xFF800000> : vector<128xf32>
    %31 = vector.multi_reduction <maximumf>, %30, %cst_15 [1] : vector<128x128xf32> to vector<128xf32>
    %32 = vector.shape_cast %31 : vector<128xf32> to vector<128x1xf32>
    %cst_16 = arith.constant 1.000000e+00 : f32
    %33 = vector.broadcast %cst_16 : f32 to vector<128x128xf32>
    %34 = arith.subf %33, %25 : vector<128x128xf32>
    %cst_17 = arith.constant 1.000000e+09 : f32
    %35 = vector.broadcast %cst_17 : f32 to vector<128x128xf32>
    %36 = arith.mulf %34, %35 : vector<128x128xf32>
    %37 = arith.addf %10, %36 : vector<128x128xf32>
    %cst_18 = arith.constant dense<0x7F800000> : vector<128xf32>
    %38 = vector.multi_reduction <minimumf>, %37, %cst_18 [1] : vector<128x128xf32> to vector<128xf32>
    %39 = vector.shape_cast %38 : vector<128xf32> to vector<128x1xf32>
    %cst_19 = arith.constant 9.99999996E-13 : f32
    %40 = vector.broadcast %cst_19 : f32 to vector<128x1xf32>
    %41 = arith.maximumf %32, %40 : vector<128x1xf32>
    %42 = math.sqrt %41 : vector<128x1xf32>
    %cst_20 = arith.constant 9.99999996E-13 : f32
    %43 = vector.broadcast %cst_20 : f32 to vector<128x1xf32>
    %44 = arith.maximumf %39, %43 : vector<128x1xf32>
    %45 = math.sqrt %44 : vector<128x1xf32>
    %c128_i32 = arith.constant 128 : i32
    %46 = arith.muli %arg0, %c128_i32 : i32
    %47 = tpu.iota {dimensions = array<i32: 0>} : vector<128x1xi32>
    %48 = vector.broadcast %46 : i32 to vector<128x1xi32>
    %49 = arith.addi %48, %47 : vector<128x1xi32>
    %c8_i32_21 = arith.constant 8 : i32
    %50 = vector.broadcast %c8_i32_21 : i32 to vector<128x1xi32>
    %51 = arith.cmpi slt, %49, %50 : vector<128x1xi32>
    %52 = arith.extui %51 : vector<128x1xi1> to vector<128x1xi32>
    %53 = arith.sitofp %52 : vector<128x1xi32> to vector<128x1xf32>
    %54 = arith.subf %42, %45 : vector<128x1xf32>
    %cst_22 = arith.constant 3.000000e-01 : f32
    %55 = vector.broadcast %cst_22 : f32 to vector<128x1xf32>
    %56 = arith.addf %54, %55 : vector<128x1xf32>
    %cst_23 = arith.constant 0.000000e+00 : f32
    %57 = vector.broadcast %cst_23 : f32 to vector<128x1xf32>
    %58 = arith.maximumf %56, %57 : vector<128x1xf32>
    %59 = arith.mulf %58, %53 : vector<128x1xf32>
    %c0_24 = arith.constant 0 : index
    %c0_25 = arith.constant 0 : index
    %60 = vector.load %arg7[%c0_24, %c0_25] : memref<128x1xf32, #tpu.memory_space<vmem>>, vector<128x1xf32>
    tpu.vector_store %arg7[%c0_24, %c0_25], %59 {strides = array<i32>} : memref<128x1xf32, #tpu.memory_space<vmem>>, vector<128x1xf32>,
    return
  }
  func.func @transform_0(%arg0: i32) -> (i32, i32) {
    %c0_i32 = arith.constant 0 : i32
    %c0_i32_0 = arith.constant 0 : i32
    return %arg0, %c0_i32 : i32, i32
  }
  func.func @transform_1(%arg0: i32) -> (i32, i32) {
    %c0_i32 = arith.constant 0 : i32
    %c0_i32_0 = arith.constant 0 : i32
    %c0_i32_1 = arith.constant 0 : i32
    return %c0_i32, %c0_i32_0 : i32, i32
  }
  func.func @transform_2(%arg0: i32) -> (i32, i32) {
    %c0_i32 = arith.constant 0 : i32
    %c0_i32_0 = arith.constant 0 : i32
    return %arg0, %c0_i32 : i32, i32
  }
  func.func @transform_3(%arg0: i32) -> (i32, i32) {
    %c0_i32 = arith.constant 0 : i32
    %c0_i32_0 = arith.constant 0 : i32
    %c0_i32_1 = arith.constant 0 : i32
    return %c0_i32, %c0_i32_0 : i32, i32
  }
  func.func @transform_4(%arg0: i32) -> (i32, i32) {
    %c0_i32 = arith.constant 0 : i32
    %c0_i32_0 = arith.constant 0 : i32
    return %arg0, %c0_i32 : i32, i32
  }
  func.func @transform_5(%arg0: i32) -> (i32, i32) {
    %c0_i32 = arith.constant 0 : i32
    %c0_i32_0 = arith.constant 0 : i32
    %c0_i32_1 = arith.constant 0 : i32
    return %c0_i32, %c0_i32_0 : i32, i32
  }
  func.func @transform_6(%arg0: i32) -> (i32, i32) {
    %c0_i32 = arith.constant 0 : i32
    %c0_i32_0 = arith.constant 0 : i32
    return %arg0, %c0_i32 : i32, i32
  }
}

</mosaic_0001>

<llo_original>
// kernel: tpu_custom_call.1
$region0: #{tpu_custom_call.1}
  #allocation0 [shape = 'u32[]', space=smem, size = 0x4, offset = 0x4, fixed_abs, tag = 'smem constant byte address 0x4 - core index']
  #allocation1 [shape = 'u32[144,128]{1,0:T(1,128)}', space=vmem, size = 0x12000, scoped, tag = 'internal scratch']
  %s0 = inlined_call_operand.hbm [shape: f32[128,32], index: 0, kind: input, shape index: {}]
  %s1 = inlined_call_operand.hbm [shape: f32[128,32], index: 1, kind: input, shape index: {}]
  %s2 = inlined_call_operand.hbm [shape: f32[128,1], index: 2, kind: input, shape index: {}]
  %s3 = inlined_call_operand.hbm [shape: f32[1,128], index: 3, kind: input, shape index: {}]
  %s4 = inlined_call_operand.hbm [shape: s32[128,1], index: 4, kind: input, shape index: {}]
  %s5 = inlined_call_operand.hbm [shape: s32[1,128], index: 5, kind: input, shape index: {}]
  %s6 = inlined_call_operand.hbm [shape: f32[128,1], index: 6, kind: output, shape index: {}]
  %s7 = sld [smem:[#allocation0]]
  $region58: #{tpu_custom_call.1} parent=0
    _
  %s9 = ssub.s32 1, %s7
  %s10 = scalar_select 0, %s9, %s7
  $region1: #{tpu_custom_call.1} parent=0
    #allocation2 [shape = 'u8[65536]{0}', space=vmem, size = 0x10000, scoped, tag = 'input window, operand 0, single buffered']
    #allocation3 [shape = 's32[1]{0}', space=sflag, size = 0x4, scoped, tag = 'scoped memory for tpu_custom_call.1']
    #allocation4 [shape = 's32[1]{0}', space=sflag, size = 0x4, scoped, tag = 'scoped memory for tpu_custom_call.1']
    #allocation5 [shape = 'u8[65536]{0}', space=vmem, size = 0x10000, scoped, tag = 'input window, operand 1, single buffered']
    #allocation6 [shape = 's32[1]{0}', space=sflag, size = 0x4, scoped, tag = 'scoped memory for tpu_custom_call.1']
    #allocation7 [shape = 'u8[65536]{0}', space=vmem, size = 0x10000, scoped, tag = 'input window, operand 2, single buffered']
    #allocation8 [shape = 'u8[512]{0}', space=vmem, size = 0x400, scoped, tag = 'input window, operand 3, single buffered']
    #allocation9 [shape = 's32[1]{0}', space=sflag, size = 0x4, scoped, tag = 'scoped memory for tpu_custom_call.1']
    #allocation10 [shape = 'u8[65536]{0}', space=vmem, size = 0x10000, scoped, tag = 'input window, operand 4, single buffered']
    #allocation11 [shape = 'u8[512]{0}', space=vmem, size = 0x400, scoped, tag = 'input window, operand 5, single buffered']
    #allocation12 [shape = 's32[1]{0}', space=sflag, size = 0x4, scoped, tag = 'scoped memory for tpu_custom_call.1']
    #allocation13 [shape = 'u8[65536]{0}', space=vmem, size = 0x10000, scoped, tag = 'output window, operand 0, single buffered']
    %11 = vsyncpa [#allocation3], 0
    %12 = vsyncpa [#allocation6], 0
    %13 = vsyncpa [#allocation9], 0
    %14 = vsyncpa [#allocation12], 0
    %15 = vsyncpa [#allocation4], 0
    // Predicated region
    $region2: #{tpu_custom_call.1} parent=1 // pred_check
      _
    $region3: #{tpu_custom_call.1} parent=1 // pred_check_branch
      %17 = sbr.rel (0) target = $region5
    $region4: #{tpu_custom_call.1} parent=1 // pred_region
      %s19 = ssub.s32 2048, 2048
      %20 = vsyncadd [#allocation3], %s19
      %s21 = sshll.u32 [#allocation2], 4
      %s22 = int_to_ptr.vmem [resolvable:$true] %s21
      %27 = dma.hbm_to_vmem [thread:$0]  %s0, 2048, %s22, [#allocation3], 128, 128, 8
    $region5: #{tpu_custom_call.1} parent=1 // pred_fallthru
      _
    // Predicated region
    $region6: #{tpu_custom_call.1} parent=1 // pred_check
      _
    $region7: #{tpu_custom_call.1} parent=1 // pred_check_branch
      %29 = sbr.rel (0) target = $region9
    $region8: #{tpu_custom_call.1} parent=1 // pred_region
      %s31 = ssub.s32 2048, 2048
      %32 = vsyncadd [#allocation6], %s31
      %s33 = sshll.u32 [#allocation5], 4
      %s34 = int_to_ptr.vmem [resolvable:$true] %s33
      %39 = dma.hbm_to_vmem [thread:$0]  %s1, 2048, %s34, [#allocation6], 128, 128, 8
    $region9: #{tpu_custom_call.1} parent=1 // pred_fallthru
      _
    // Predicated region
    $region10: #{tpu_custom_call.1} parent=1 // pred_check
      _
    $region11: #{tpu_custom_call.1} parent=1 // pred_check_branch
      %41 = sbr.rel (0) target = $region13
    $region12: #{tpu_custom_call.1} parent=1 // pred_region
      %s43 = ssub.s32 2048, 2048
      %44 = vsyncadd [#allocation6], %s43
      %s45 = sshll.u32 [#allocation7], 4
      %s46 = int_to_ptr.vmem [resolvable:$true] %s45
      %51 = dma.hbm_to_vmem [thread:$0]  %s2, 2048, %s46, [#allocation6], 128, 128, 8
    $region13: #{tpu_custom_call.1} parent=1 // pred_fallthru
      _
    // Predicated region
    $region14: #{tpu_custom_call.1} parent=1 // pred_check
      _
    $region15: #{tpu_custom_call.1} parent=1 // pred_check_branch
      %53 = sbr.rel (0) target = $region17
    $region16: #{tpu_custom_call.1} parent=1 // pred_region
      %s55 = ssub.s32 16, 16
      %56 = vsyncadd [#allocation9], %s55
      %s58 = sshll.u32 [#allocation8], 4
      %s59 = int_to_ptr.vmem [resolvable:$true] %s58
      %61 = dma.hbm_to_vmem [thread:$0]  %s3, 16, %s59, [#allocation9]
    $region17: #{tpu_custom_call.1} parent=1 // pred_fallthru
      _
    // Predicated region
    $region18: #{tpu_custom_call.1} parent=1 // pred_check
      _
    $region19: #{tpu_custom_call.1} parent=1 // pred_check_branch
      %63 = sbr.rel (0) target = $region21
    $region20: #{tpu_custom_call.1} parent=1 // pred_region
      %s65 = ssub.s32 2048, 2048
      %66 = vsyncadd [#allocation9], %s65
      %s67 = sshll.u32 [#allocation10], 4
      %s68 = int_to_ptr.vmem [resolvable:$true] %s67
      %73 = dma.hbm_to_vmem [thread:$0]  %s4, 2048, %s68, [#allocation9], 128, 128, 8
    $region21: #{tpu_custom_call.1} parent=1 // pred_fallthru
      _
    // Predicated region
    $region22: #{tpu_custom_call.1} parent=1 // pred_check
      _
    $region23: #{tpu_custom_call.1} parent=1 // pred_check_branch
      %75 = sbr.rel (0) target = $region25
    $region24: #{tpu_custom_call.1} parent=1 // pred_region
      %s77 = ssub.s32 16, 16
      %78 = vsyncadd [#allocation12], %s77
      %s80 = sshll.u32 [#allocation11], 4
      %s81 = int_to_ptr.vmem [resolvable:$true] %s80
      %83 = dma.hbm_to_vmem [thread:$0]  %s5, 16, %s81, [#allocation12]
    $region25: #{tpu_custom_call.1} parent=1 // pred_fallthru
      _
    // Predicated region
    $region26: #{tpu_custom_call.1} parent=1 // pred_check
      _
    $region27: #{tpu_custom_call.1} parent=1 // pred_check_branch
      %85 = sbr.rel (0) target = $region29
    $region28: #{tpu_custom_call.1} parent=1 // pred_region
      %86 = dma.done [#allocation3], 2048
    $region29: #{tpu_custom_call.1} parent=1 // pred_fallthru
      _
    // Predicated region
    $region30: #{tpu_custom_call.1} parent=1 // pred_check
      _
    $region31: #{tpu_custom_call.1} parent=1 // pred_check_branch
      %88 = sbr.rel (0) target = $region33
    $region32: #{tpu_custom_call.1} parent=1 // pred_region
      %89 = dma.done [#allocation6], 2048
    $region33: #{tpu_custom_call.1} parent=1 // pred_fallthru
      _
    // Predicated region
    $region34: #{tpu_custom_call.1} parent=1 // pred_check
      _
    $region35: #{tpu_custom_call.1} parent=1 // pred_check_branch
      %91 = sbr.rel (0) target = $region37
    $region36: #{tpu_custom_call.1} parent=1 // pred_region
      %92 = dma.done [#allocation6], 2048
    $region37: #{tpu_custom_call.1} parent=1 // pred_fallthru
      _
    // Predicated region
    $region38: #{tpu_custom_call.1} parent=1 // pred_check
      _
    $region39: #{tpu_custom_call.1} parent=1 // pred_check_branch
      %94 = sbr.rel (0) target = $region41
    $region40: #{tpu_custom_call.1} parent=1 // pred_region
      %95 = dma.done [#allocation9], 16
    $region41: #{tpu_custom_call.1} parent=1 // pred_fallthru
      _
    // Predicated region
    $region42: #{tpu_custom_call.1} parent=1 // pred_check
      _
    $region43: #{tpu_custom_call.1} parent=1 // pred_check_branch
      %97 = sbr.rel (0) target = $region45
    $region44: #{tpu_custom_call.1} parent=1 // pred_region
      %98 = dma.done [#allocation9], 2048
    $region45: #{tpu_custom_call.1} parent=1 // pred_fallthru
      _
    // Predicated region
    $region46: #{tpu_custom_call.1} parent=1 // pred_check
      _
    $region47: #{tpu_custom_call.1} parent=1 // pred_check_branch
      %100 = sbr.rel (0) target = $region49
    $region48: #{tpu_custom_call.1} parent=1 // pred_region
      %101 = dma.done [#allocation12], 16
    $region49: #{tpu_custom_call.1} parent=1 // pred_fallthru
      _
    %v102 = vld [vmem:[#allocation2] sm:$0xff]
    %v103 = vld [vmem:[#allocation2 + $0x8] sm:$0xff]
    %v104 = vld [vmem:[#allocation2 + $0x10] sm:$0xff]
    %v105 = vld [vmem:[#allocation2 + $0x18] sm:$0xff]
    %v106 = vld [vmem:[#allocation2 + $0x20] sm:$0xff]
    %v107 = vld [vmem:[#allocation2 + $0x28] sm:$0xff]
    %v108 = vld [vmem:[#allocation2 + $0x30] sm:$0xff]
    %v109 = vld [vmem:[#allocation2 + $0x38] sm:$0xff]
    %v110 = vld [vmem:[#allocation2 + $0x40] sm:$0xff]
    %v111 = vld [vmem:[#allocation2 + $0x48] sm:$0xff]
    %v112 = vld [vmem:[#allocation2 + $0x50] sm:$0xff]
    %v113 = vld [vmem:[#allocation2 + $0x58] sm:$0xff]
    %v114 = vld [vmem:[#allocation2 + $0x60] sm:$0xff]
    %v115 = vld [vmem:[#allocation2 + $0x68] sm:$0xff]
    %v116 = vld [vmem:[#allocation2 + $0x70] sm:$0xff]
    %v117 = vld [vmem:[#allocation2 + $0x78] sm:$0xff]
    %v118 = vmul.f32 %v102, -2.0
    %v119 = vmul.f32 %v103, -2.0
    %v120 = vmul.f32 %v104, -2.0
    %v121 = vmul.f32 %v105, -2.0
    %v122 = vmul.f32 %v106, -2.0
    %v123 = vmul.f32 %v107, -2.0
    %v124 = vmul.f32 %v108, -2.0
    %v125 = vmul.f32 %v109, -2.0
    %v126 = vmul.f32 %v110, -2.0
    %v127 = vmul.f32 %v111, -2.0
    %v128 = vmul.f32 %v112, -2.0
    %v129 = vmul.f32 %v113, -2.0
    %v130 = vmul.f32 %v114, -2.0
    %v131 = vmul.f32 %v115, -2.0
    %v132 = vmul.f32 %v116, -2.0
    %v133 = vmul.f32 %v117, -2.0
    %v134 = vld [vmem:[#allocation5] sm:$0xff]
    %v135 = vld [vmem:[#allocation5 + $0x8] sm:$0xff]
    %v136 = vld [vmem:[#allocation5 + $0x10] sm:$0xff]
    %v137 = vld [vmem:[#allocation5 + $0x18] sm:$0xff]
    %v138 = vld [vmem:[#allocation5 + $0x20] sm:$0xff]
    %v139 = vld [vmem:[#allocation5 + $0x28] sm:$0xff]
    %v140 = vld [vmem:[#allocation5 + $0x30] sm:$0xff]
    %v141 = vld [vmem:[#allocation5 + $0x38] sm:$0xff]
    %v142 = vld [vmem:[#allocation5 + $0x40] sm:$0xff]
    %v143 = vld [vmem:[#allocation5 + $0x48] sm:$0xff]
    %v144 = vld [vmem:[#allocation5 + $0x50] sm:$0xff]
    %v145 = vld [vmem:[#allocation5 + $0x58] sm:$0xff]
    %v146 = vld [vmem:[#allocation5 + $0x60] sm:$0xff]
    %v147 = vld [vmem:[#allocation5 + $0x68] sm:$0xff]
    %v148 = vld [vmem:[#allocation5 + $0x70] sm:$0xff]
    %v149 = vld [vmem:[#allocation5 + $0x78] sm:$0xff]
    %vm150 = vcmask 261120
    %v152 = vsel %vm150, %v118, 0
    %v155 = vsel %vm150, %v119, 0
    %v158 = vsel %vm150, %v120, 0
    %v161 = vsel %vm150, %v121, 0
    %v164 = vsel %vm150, %v122, 0
    %v167 = vsel %vm150, %v123, 0
    %v170 = vsel %vm150, %v124, 0
    %v173 = vsel %vm150, %v125, 0
    %v176 = vsel %vm150, %v126, 0
    %v179 = vsel %vm150, %v127, 0
    %v182 = vsel %vm150, %v128, 0
    %v185 = vsel %vm150, %v129, 0
    %v188 = vsel %vm150, %v130, 0
    %v191 = vsel %vm150, %v131, 0
    %v194 = vsel %vm150, %v132, 0
    %v197 = vsel %vm150, %v133, 0
    %v200 = vsel %vm150, %v134, 0
    %v203 = vsel %vm150, %v135, 0
    %v206 = vsel %vm150, %v136, 0
    %v209 = vsel %vm150, %v137, 0
    %v212 = vsel %vm150, %v138, 0
    %v215 = vsel %vm150, %v139, 0
    %v218 = vsel %vm150, %v140, 0
    %v221 = vsel %vm150, %v141, 0
    %v224 = vsel %vm150, %v142, 0
    %v227 = vsel %vm150, %v143, 0
    %v230 = vsel %vm150, %v144, 0
    %v233 = vsel %vm150, %v145, 0
    %v236 = vsel %vm150, %v146, 0
    %v239 = vsel %vm150, %v147, 0
    %v242 = vsel %vm150, %v148, 0
    %v245 = vsel %vm150, %v149, 0
    %247 = vmatprep.subr.mxu0 0.0
    %248 = vmatpush1.xpose.msra.mxu0 %v200
    %249 = vmatprep.subr.mxu0 0.0
    %250 = vmatpush1.xpose.msra.mxu0 %v203
    %251 = vmatprep.subr.mxu0 0.0
    %252 = vmatpush1.xpose.msra.mxu0 %v206
    %253 = vmatprep.subr.mxu0 0.0
    %254 = vmatpush1.xpose.msra.mxu0 %v209
    %255 = vmatprep.subr.mxu0 0.0
    %256 = vmatpush1.xpose.msra.mxu0 %v212
    %257 = vmatprep.subr.mxu0 0.0
    %258 = vmatpush1.xpose.msra.mxu0 %v215
    %259 = vmatprep.subr.mxu0 0.0
    %260 = vmatpush1.xpose.msra.mxu0 %v218
    %261 = vmatprep.subr.mxu0 0.0
    %262 = vmatpush1.xpose.msra.mxu0 %v221
    %263 = vmatprep.subr.mxu0 0.0
    %264 = vmatpush1.xpose.msra.mxu0 %v224
    %265 = vmatprep.subr.mxu0 0.0
    %266 = vmatpush1.xpose.msra.mxu0 %v227
    %267 = vmatprep.subr.mxu0 0.0
    %268 = vmatpush1.xpose.msra.mxu0 %v230
    %269 = vmatprep.subr.mxu0 0.0
    %270 = vmatpush1.xpose.msra.mxu0 %v233
    %271 = vmatprep.subr.mxu0 0.0
    %272 = vmatpush1.xpose.msra.mxu0 %v236
    %273 = vmatprep.subr.mxu0 0.0
    %274 = vmatpush1.xpose.msra.mxu0 %v239
    %275 = vmatprep.subr.mxu0 0.0
    %276 = vmatpush1.xpose.msra.mxu0 %v242
    %277 = vmatprep.subr.mxu0 0.0
    %278 = vmatpush1.xpose.msra.mxu0 %v245
    %279 = vmatprep.subr.mxu0 0.0
    %280 = vmatpush1.xpose.msra.mxu0 0.0
    %281 = vmatprep.subr.mxu0 0.0
    %282 = vmatpush1.xpose.msra.mxu0 0.0
    %283 = vmatprep.subr.mxu0 0.0
    %284 = vmatpush1.xpose.msra.mxu0 0.0
    %285 = vmatprep.subr.mxu0 0.0
    %286 = vmatpush1.xpose.msra.mxu0 0.0
    %287 = vmatprep.subr.mxu0 0.0
    %288 = vmatpush1.xpose.msra.mxu0 0.0
    %289 = vmatprep.subr.mxu0 0.0
    %290 = vmatpush1.xpose.msra.mxu0 0.0
    %291 = vmatprep.subr.mxu0 0.0
    %292 = vmatpush1.xpose.msra.mxu0 0.0
    %293 = vmatprep.subr.mxu0 0.0
    %294 = vmatpush1.xpose.msra.mxu0 0.0
    %295 = vmatprep.subr.mxu0 0.0
    %296 = vmatpush1.xpose.msra.mxu0 0.0
    %297 = vmatprep.subr.mxu0 0.0
    %298 = vmatpush1.xpose.msra.mxu0 0.0
    %299 = vmatprep.subr.mxu0 0.0
    %300 = vmatpush1.xpose.msra.mxu0 0.0
    %301 = vmatprep.subr.mxu0 0.0
    %302 = vmatpush1.xpose.msra.mxu0 0.0
    %303 = vmatprep.subr.mxu0 0.0
    %304 = vmatpush1.xpose.msra.mxu0 0.0
    %305 = vmatprep.subr.mxu0 0.0
    %306 = vmatpush1.xpose.msra.mxu0 0.0
    %307 = vmatprep.subr.mxu0 0.0
    %308 = vmatpush1.xpose.msra.mxu0 0.0
    %309 = vmatprep.subr.mxu0 0.0
    %310 = vmatpush1.xpose.msra.mxu0 0.0
    %311 = vmatprep.mubr.f32.mxu0 0.0
    %312 = vmatmul.mubr.f32.gmra.mrb[0].mxu0 %v152
    %v313 = vpop.f32.mrb[0].mxu0
    %v314 = vadd.f32 0.0, %v313
    %v315 = vpop.f32.mrb[0].mxu0
    %316 = vmatprep.mubr.f32.mxu0 0.0
    %317 = vmatmul.mubr.f32.gmra.mrb[0].mxu0 %v155
    %v318 = vpop.f32.mrb[0].mxu0
    %v319 = vadd.f32 0.0, %v318
    %v320 = vpop.f32.mrb[0].mxu0
    %321 = vmatprep.mubr.f32.mxu0 0.0
    %322 = vmatmul.mubr.f32.gmra.mrb[0].mxu0 %v158
    %v323 = vpop.f32.mrb[0].mxu0
    %v324 = vadd.f32 0.0, %v323
    %v325 = vpop.f32.mrb[0].mxu0
    %326 = vmatprep.mubr.f32.mxu0 0.0
    %327 = vmatmul.mubr.f32.gmra.mrb[0].mxu0 %v161
    %v328 = vpop.f32.mrb[0].mxu0
    %v329 = vadd.f32 0.0, %v328
    %v330 = vpop.f32.mrb[0].mxu0
    %331 = vmatprep.mubr.f32.mxu0 0.0
    %332 = vmatmul.mubr.f32.gmra.mrb[0].mxu0 %v164
    %v333 = vpop.f32.mrb[0].mxu0
    %v334 = vadd.f32 0.0, %v333
    %v335 = vpop.f32.mrb[0].mxu0
    %336 = vmatprep.mubr.f32.mxu0 0.0
    %337 = vmatmul.mubr.f32.gmra.mrb[0].mxu0 %v167
    %v338 = vpop.f32.mrb[0].mxu0
    %v339 = vadd.f32 0.0, %v338
    %v340 = vpop.f32.mrb[0].mxu0
    %341 = vmatprep.mubr.f32.mxu0 0.0
    %342 = vmatmul.mubr.f32.gmra.mrb[0].mxu0 %v170
    %v343 = vpop.f32.mrb[0].mxu0
    %v344 = vadd.f32 0.0, %v343
    %v345 = vpop.f32.mrb[0].mxu0
    %346 = vmatprep.mubr.f32.mxu0 0.0
    %347 = vmatmul.mubr.f32.gmra.mrb[0].mxu0 %v173
    %v348 = vpop.f32.mrb[0].mxu0
    %v349 = vadd.f32 0.0, %v348
    %v350 = vpop.f32.mrb[0].mxu0
    %351 = vmatprep.mubr.f32.mxu0 0.0
    %352 = vmatmul.mubr.f32.gmra.mrb[0].mxu0 %v176
    %v353 = vpop.f32.mrb[0].mxu0
    %v354 = vadd.f32 0.0, %v353
    %v355 = vpop.f32.mrb[0].mxu0
    %356 = vmatprep.mubr.f32.mxu0 0.0
    %357 = vmatmul.mubr.f32.gmra.mrb[0].mxu0 %v179
    %v358 = vpop.f32.mrb[0].mxu0
    %v359 = vadd.f32 0.0, %v358
    %v360 = vpop.f32.mrb[0].mxu0
    %361 = vmatprep.mubr.f32.mxu0 0.0
    %362 = vmatmul.mubr.f32.gmra.mrb[0].mxu0 %v182
    %v363 = vpop.f32.mrb[0].mxu0
    %v364 = vadd.f32 0.0, %v363
    %v365 = vpop.f32.mrb[0].mxu0
    %366 = vmatprep.mubr.f32.mxu0 0.0
    %367 = vmatmul.mubr.f32.gmra.mrb[0].mxu0 %v185
    %v368 = vpop.f32.mrb[0].mxu0
    %v369 = vadd.f32 0.0, %v368
    %v370 = vpop.f32.mrb[0].mxu0
    %371 = vmatprep.mubr.f32.mxu0 0.0
    %372 = vmatmul.mubr.f32.gmra.mrb[0].mxu0 %v188
    %v373 = vpop.f32.mrb[0].mxu0
    %v374 = vadd.f32 0.0, %v373
    %v375 = vpop.f32.mrb[0].mxu0
    %376 = vmatprep.mubr.f32.mxu0 0.0
    %377 = vmatmul.mubr.f32.gmra.mrb[0].mxu0 %v191
    %v378 = vpop.f32.mrb[0].mxu0
    %v379 = vadd.f32 0.0, %v378
    %v380 = vpop.f32.mrb[0].mxu0
    %381 = vmatprep.mubr.f32.mxu0 0.0
    %382 = vmatmul.mubr.f32.gmra.mrb[0].mxu0 %v194
    %v383 = vpop.f32.mrb[0].mxu0
    %v384 = vadd.f32 0.0, %v383
    %v385 = vpop.f32.mrb[0].mxu0
    %386 = vmatprep.mubr.f32.mxu0 0.0
    %387 = vmatmul.mubr.f32.gmra.mrb[0].mxu0 %v197
    %v388 = vpop.f32.mrb[0].mxu0
    %v389 = vadd.f32 0.0, %v388
    %v390 = vpop.f32.mrb[0].mxu0
    %391 = vdwg.mxu0
    %v392 = vld [vmem:[#allocation7] sm:$0xff]
    %v393 = vld [vmem:[#allocation7 + $0x8] sm:$0xff]
    %v394 = vld [vmem:[#allocation7 + $0x10] sm:$0xff]
    %v395 = vld [vmem:[#allocation7 + $0x18] sm:$0xff]
    %v396 = vld [vmem:[#allocation7 + $0x20] sm:$0xff]
    %v397 = vld [vmem:[#allocation7 + $0x28] sm:$0xff]
    %v398 = vld [vmem:[#allocation7 + $0x30] sm:$0xff]
    %v399 = vld [vmem:[#allocation7 + $0x38] sm:$0xff]
    %v400 = vld [vmem:[#allocation7 + $0x40] sm:$0xff]
    %v401 = vld [vmem:[#allocation7 + $0x48] sm:$0xff]
    %v402 = vld [vmem:[#allocation7 + $0x50] sm:$0xff]
    %v403 = vld [vmem:[#allocation7 + $0x58] sm:$0xff]
    %v404 = vld [vmem:[#allocation7 + $0x60] sm:$0xff]
    %v405 = vld [vmem:[#allocation7 + $0x68] sm:$0xff]
    %v406 = vld [vmem:[#allocation7 + $0x70] sm:$0xff]
    %v407 = vld [vmem:[#allocation7 + $0x78] sm:$0xff]
    %v408 = vld [vmem:[#allocation8] sm:$0x1]
    %410 = vset.pattern.permute.xlu0 0
    %411 = vperm.xlu0 %410, %v392
    %v412 = vpop.permute.xlu0 %411
    %415 = vset.pattern.permute.xlu0 0
    %416 = vperm.xlu0 %415, %v393
    %v417 = vpop.permute.xlu0 %416
    %420 = vset.pattern.permute.xlu0 0
    %421 = vperm.xlu0 %420, %v394
    %v422 = vpop.permute.xlu0 %421
    %425 = vset.pattern.permute.xlu0 0
    %426 = vperm.xlu0 %425, %v395
    %v427 = vpop.permute.xlu0 %426
    %430 = vset.pattern.permute.xlu0 0
    %431 = vperm.xlu0 %430, %v396
    %v432 = vpop.permute.xlu0 %431
    %435 = vset.pattern.permute.xlu0 0
    %436 = vperm.xlu0 %435, %v397
    %v437 = vpop.permute.xlu0 %436
    %440 = vset.pattern.permute.xlu0 0
    %441 = vperm.xlu0 %440, %v398
    %v442 = vpop.permute.xlu0 %441
    %445 = vset.pattern.permute.xlu0 0
    %446 = vperm.xlu0 %445, %v399
    %v447 = vpop.permute.xlu0 %446
    %450 = vset.pattern.permute.xlu0 0
    %451 = vperm.xlu0 %450, %v400
    %v452 = vpop.permute.xlu0 %451
    %455 = vset.pattern.permute.xlu0 0
    %456 = vperm.xlu0 %455, %v401
    %v457 = vpop.permute.xlu0 %456
    %460 = vset.pattern.permute.xlu0 0
    %461 = vperm.xlu0 %460, %v402
    %v462 = vpop.permute.xlu0 %461
    %465 = vset.pattern.permute.xlu0 0
    %466 = vperm.xlu0 %465, %v403
    %v467 = vpop.permute.xlu0 %466
    %470 = vset.pattern.permute.xlu0 0
    %471 = vperm.xlu0 %470, %v404
    %v472 = vpop.permute.xlu0 %471
    %475 = vset.pattern.permute.xlu0 0
    %476 = vperm.xlu0 %475, %v405
    %v477 = vpop.permute.xlu0 %476
    %480 = vset.pattern.permute.xlu0 0
    %481 = vperm.xlu0 %480, %v406
    %v482 = vpop.permute.xlu0 %481
    %485 = vset.pattern.permute.xlu0 0
    %486 = vperm.xlu0 %485, %v407
    %v487 = vpop.permute.xlu0 %486
    %v490 = vlaneseq
    %v491 = vshrl.u32 %v490, 7
    %v492 = vsub.s32 0, %v491
    %v493 = vrot.slane %v408, %v492
    %v495 = vadd.f32 %v412, %v493
    %v496 = vadd.f32 %v417, %v493
    %v497 = vadd.f32 %v422, %v493
    %v498 = vadd.f32 %v427, %v493
    %v499 = vadd.f32 %v432, %v493
    %v500 = vadd.f32 %v437, %v493
    %v501 = vadd.f32 %v442, %v493
    %v502 = vadd.f32 %v447, %v493
    %v503 = vadd.f32 %v452, %v493
    %v504 = vadd.f32 %v457, %v493
    %v505 = vadd.f32 %v462, %v493
    %v506 = vadd.f32 %v467, %v493
    %v507 = vadd.f32 %v472, %v493
    %v508 = vadd.f32 %v477, %v493
    %v509 = vadd.f32 %v482, %v493
    %v510 = vadd.f32 %v487, %v493
    %v511 = vadd.f32 %v495, %v314
    %v512 = vadd.f32 %v496, %v319
    %v513 = vadd.f32 %v497, %v324
    %v514 = vadd.f32 %v498, %v329
    %v515 = vadd.f32 %v499, %v334
    %v516 = vadd.f32 %v500, %v339
    %v517 = vadd.f32 %v501, %v344
    %v518 = vadd.f32 %v502, %v349
    %v519 = vadd.f32 %v503, %v354
    %v520 = vadd.f32 %v504, %v359
    %v521 = vadd.f32 %v505, %v364
    %v522 = vadd.f32 %v506, %v369
    %v523 = vadd.f32 %v507, %v374
    %v524 = vadd.f32 %v508, %v379
    %v525 = vadd.f32 %v509, %v384
    %v526 = vadd.f32 %v510, %v389
    %v527 = vld [vmem:[#allocation10] sm:$0xff]
    %v528 = vld [vmem:[#allocation10 + $0x8] sm:$0xff]
    %v529 = vld [vmem:[#allocation10 + $0x10] sm:$0xff]
    %v530 = vld [vmem:[#allocation10 + $0x18] sm:$0xff]
    %v531 = vld [vmem:[#allocation10 + $0x20] sm:$0xff]
    %v532 = vld [vmem:[#allocation10 + $0x28] sm:$0xff]
    %v533 = vld [vmem:[#allocation10 + $0x30] sm:$0xff]
    %v534 = vld [vmem:[#allocation10 + $0x38] sm:$0xff]
    %v535 = vld [vmem:[#allocation10 + $0x40] sm:$0xff]
    %v536 = vld [vmem:[#allocation10 + $0x48] sm:$0xff]
    %v537 = vld [vmem:[#allocation10 + $0x50] sm:$0xff]
    %v538 = vld [vmem:[#allocation10 + $0x58] sm:$0xff]
    %v539 = vld [vmem:[#allocation10 + $0x60] sm:$0xff]
    %v540 = vld [vmem:[#allocation10 + $0x68] sm:$0xff]
    %v541 = vld [vmem:[#allocation10 + $0x70] sm:$0xff]
    %v542 = vld [vmem:[#allocation10 + $0x78] sm:$0xff]
    %v543 = vld [vmem:[#allocation11] sm:$0x1]
    %544 = vset.pattern.permute.xlu0 0
    %545 = vperm.xlu0 %544, %v527
    %v546 = vpop.permute.xlu0 %545
    %547 = vset.pattern.permute.xlu0 0
    %548 = vperm.xlu0 %547, %v528
    %v549 = vpop.permute.xlu0 %548
    %550 = vset.pattern.permute.xlu0 0
    %551 = vperm.xlu0 %550, %v529
    %v552 = vpop.permute.xlu0 %551
    %553 = vset.pattern.permute.xlu0 0
    %554 = vperm.xlu0 %553, %v530
    %v555 = vpop.permute.xlu0 %554
    %556 = vset.pattern.permute.xlu0 0
    %557 = vperm.xlu0 %556, %v531
    %v558 = vpop.permute.xlu0 %557
    %559 = vset.pattern.permute.xlu0 0
    %560 = vperm.xlu0 %559, %v532
    %v561 = vpop.permute.xlu0 %560
    %562 = vset.pattern.permute.xlu0 0
    %563 = vperm.xlu0 %562, %v533
    %v564 = vpop.permute.xlu0 %563
    %565 = vset.pattern.permute.xlu0 0
    %566 = vperm.xlu0 %565, %v534
    %v567 = vpop.permute.xlu0 %566
    %568 = vset.pattern.permute.xlu0 0
    %569 = vperm.xlu0 %568, %v535
    %v570 = vpop.permute.xlu0 %569
    %571 = vset.pattern.permute.xlu0 0
    %572 = vperm.xlu0 %571, %v536
    %v573 = vpop.permute.xlu0 %572
    %574 = vset.pattern.permute.xlu0 0
    %575 = vperm.xlu0 %574, %v537
    %v576 = vpop.permute.xlu0 %575
    %577 = vset.pattern.permute.xlu0 0
    %578 = vperm.xlu0 %577, %v538
    %v579 = vpop.permute.xlu0 %578
    %580 = vset.pattern.permute.xlu0 0
    %581 = vperm.xlu0 %580, %v539
    %v582 = vpop.permute.xlu0 %581
    %583 = vset.pattern.permute.xlu0 0
    %584 = vperm.xlu0 %583, %v540
    %v585 = vpop.permute.xlu0 %584
    %586 = vset.pattern.permute.xlu0 0
    %587 = vperm.xlu0 %586, %v541
    %v588 = vpop.permute.xlu0 %587
    %589 = vset.pattern.permute.xlu0 0
    %590 = vperm.xlu0 %589, %v542
    %v591 = vpop.permute.xlu0 %590
    %v592 = vlaneseq
    %v593 = vshrl.u32 %v592, 7
    %v594 = vsub.s32 0, %v593
    %v595 = vrot.slane %v543, %v594
    %vm596 = vcmp.eq.s32.totalorder %v546, %v595
    %vm597 = vcmp.eq.s32.totalorder %v549, %v595
    %vm598 = vcmp.eq.s32.totalorder %v552, %v595
    %vm599 = vcmp.eq.s32.totalorder %v555, %v595
    %vm600 = vcmp.eq.s32.totalorder %v558, %v595
    %vm601 = vcmp.eq.s32.totalorder %v561, %v595
    %vm602 = vcmp.eq.s32.totalorder %v564, %v595
    %vm603 = vcmp.eq.s32.totalorder %v567, %v595
    %vm604 = vcmp.eq.s32.totalorder %v570, %v595
    %vm605 = vcmp.eq.s32.totalorder %v573, %v595
    %vm606 = vcmp.eq.s32.totalorder %v576, %v595
    %vm607 = vcmp.eq.s32.totalorder %v579, %v595
    %vm608 = vcmp.eq.s32.totalorder %v582, %v595
    %vm609 = vcmp.eq.s32.totalorder %v585, %v595
    %vm610 = vcmp.eq.s32.totalorder %v588, %v595
    %vm611 = vcmp.eq.s32.totalorder %v591, %v595
    %v612 = vlaneseq
    %v613 = vand.u32 %v612, 127
    %vm614 = vcmp.lt.s32.totalorder %v613, 8
    %vm615 = vmand %vm596, %vm614
    %vm616 = vmand %vm597, %vm614
    %vm617 = vmand %vm598, %vm614
    %vm618 = vmand %vm599, %vm614
    %vm619 = vmand %vm600, %vm614
    %vm620 = vmand %vm601, %vm614
    %vm621 = vmand %vm602, %vm614
    %vm622 = vmand %vm603, %vm614
    %vm623 = vmand %vm604, %vm614
    %vm624 = vmand %vm605, %vm614
    %vm625 = vmand %vm606, %vm614
    %vm626 = vmand %vm607, %vm614
    %vm627 = vmand %vm608, %vm614
    %vm628 = vmand %vm609, %vm614
    %vm629 = vmand %vm610, %vm614
    %vm630 = vmand %vm611, %vm614
    %vm631 = vmxor %vm596, 1
    %vm632 = vmxor %vm597, 1
    %vm633 = vmxor %vm598, 1
    %vm634 = vmxor %vm599, 1
    %vm635 = vmxor %vm600, 1
    %vm636 = vmxor %vm601, 1
    %vm637 = vmxor %vm602, 1
    %vm638 = vmxor %vm603, 1
    %vm639 = vmxor %vm604, 1
    %vm640 = vmxor %vm605, 1
    %vm641 = vmxor %vm606, 1
    %vm642 = vmxor %vm607, 1
    %vm643 = vmxor %vm608, 1
    %vm644 = vmxor %vm609, 1
    %vm645 = vmxor %vm610, 1
    %vm646 = vmxor %vm611, 1
    %vm647 = vmand %vm631, %vm614
    %vm648 = vmand %vm632, %vm614
    %vm649 = vmand %vm633, %vm614
    %vm650 = vmand %vm634, %vm614
    %vm651 = vmand %vm635, %vm614
    %vm652 = vmand %vm636, %vm614
    %vm653 = vmand %vm637, %vm614
    %vm654 = vmand %vm638, %vm614
    %vm655 = vmand %vm639, %vm614
    %vm656 = vmand %vm640, %vm614
    %vm657 = vmand %vm641, %vm614
    %vm658 = vmand %vm642, %vm614
    %vm659 = vmand %vm643, %vm614
    %vm660 = vmand %vm644, %vm614
    %vm661 = vmand %vm645, %vm614
    %vm662 = vmand %vm646, %vm614
    %v663 = vsel %vm615, 1, 0
    %v664 = vsel %vm616, 1, 0
    %v665 = vsel %vm617, 1, 0
    %v666 = vsel %vm618, 1, 0
    %v667 = vsel %vm619, 1, 0
    %v668 = vsel %vm620, 1, 0
    %v669 = vsel %vm621, 1, 0
    %v670 = vsel %vm622, 1, 0
    %v671 = vsel %vm623, 1, 0
    %v672 = vsel %vm624, 1, 0
    %v673 = vsel %vm625, 1, 0
    %v674 = vsel %vm626, 1, 0
    %v675 = vsel %vm627, 1, 0
    %v676 = vsel %vm628, 1, 0
    %v677 = vsel %vm629, 1, 0
    %v678 = vsel %vm630, 1, 0
    %v679 = vcvt.s32.f32 %v663
    %v680 = vcvt.s32.f32 %v664
    %v681 = vcvt.s32.f32 %v665
    %v682 = vcvt.s32.f32 %v666
    %v683 = vcvt.s32.f32 %v667
    %v684 = vcvt.s32.f32 %v668
    %v685 = vcvt.s32.f32 %v669
    %v686 = vcvt.s32.f32 %v670
    %v687 = vcvt.s32.f32 %v671
    %v688 = vcvt.s32.f32 %v672
    %v689 = vcvt.s32.f32 %v673
    %v690 = vcvt.s32.f32 %v674
    %v691 = vcvt.s32.f32 %v675
    %v692 = vcvt.s32.f32 %v676
    %v693 = vcvt.s32.f32 %v677
    %v694 = vcvt.s32.f32 %v678
    %v695 = vsel %vm647, 1, 0
    %v696 = vsel %vm648, 1, 0
    %v697 = vsel %vm649, 1, 0
    %v698 = vsel %vm650, 1, 0
    %v699 = vsel %vm651, 1, 0
    %v700 = vsel %vm652, 1, 0
    %v701 = vsel %vm653, 1, 0
    %v702 = vsel %vm654, 1, 0
    %v703 = vsel %vm655, 1, 0
    %v704 = vsel %vm656, 1, 0
    %v705 = vsel %vm657, 1, 0
    %v706 = vsel %vm658, 1, 0
    %v707 = vsel %vm659, 1, 0
    %v708 = vsel %vm660, 1, 0
    %v709 = vsel %vm661, 1, 0
    %v710 = vsel %vm662, 1, 0
    %v711 = vcvt.s32.f32 %v695
    %v712 = vcvt.s32.f32 %v696
    %v713 = vcvt.s32.f32 %v697
    %v714 = vcvt.s32.f32 %v698
    %v715 = vcvt.s32.f32 %v699
    %v716 = vcvt.s32.f32 %v700
    %v717 = vcvt.s32.f32 %v701
    %v718 = vcvt.s32.f32 %v702
    %v719 = vcvt.s32.f32 %v703
    %v720 = vcvt.s32.f32 %v704
    %v721 = vcvt.s32.f32 %v705
    %v722 = vcvt.s32.f32 %v706
    %v723 = vcvt.s32.f32 %v707
    %v724 = vcvt.s32.f32 %v708
    %v725 = vcvt.s32.f32 %v709
    %v726 = vcvt.s32.f32 %v710
    %v727 = vsub.f32 1.0, %v679
    %v728 = vsub.f32 1.0, %v680
    %v729 = vsub.f32 1.0, %v681
    %v730 = vsub.f32 1.0, %v682
    %v731 = vsub.f32 1.0, %v683
    %v732 = vsub.f32 1.0, %v684
    %v733 = vsub.f32 1.0, %v685
    %v734 = vsub.f32 1.0, %v686
    %v735 = vsub.f32 1.0, %v687
    %v736 = vsub.f32 1.0, %v688
    %v737 = vsub.f32 1.0, %v689
    %v738 = vsub.f32 1.0, %v690
    %v739 = vsub.f32 1.0, %v691
    %v740 = vsub.f32 1.0, %v692
    %v741 = vsub.f32 1.0, %v693
    %v742 = vsub.f32 1.0, %v694
    %v743 = vmul.f32 %v727, 1e+09
    %v744 = vmul.f32 %v728, 1e+09
    %v745 = vmul.f32 %v729, 1e+09
    %v746 = vmul.f32 %v730, 1e+09
    %v747 = vmul.f32 %v731, 1e+09
    %v748 = vmul.f32 %v732, 1e+09
    %v749 = vmul.f32 %v733, 1e+09
    %v750 = vmul.f32 %v734, 1e+09
    %v751 = vmul.f32 %v735, 1e+09
    %v752 = vmul.f32 %v736, 1e+09
    %v753 = vmul.f32 %v737, 1e+09
    %v754 = vmul.f32 %v738, 1e+09
    %v755 = vmul.f32 %v739, 1e+09
    %v756 = vmul.f32 %v740, 1e+09
    %v757 = vmul.f32 %v741, 1e+09
    %v758 = vmul.f32 %v742, 1e+09
    %v759 = vsub.f32 %v511, %v743
    %v760 = vsub.f32 %v512, %v744
    %v761 = vsub.f32 %v513, %v745
    %v762 = vsub.f32 %v514, %v746
    %v763 = vsub.f32 %v515, %v747
    %v764 = vsub.f32 %v516, %v748
    %v765 = vsub.f32 %v517, %v749
    %v766 = vsub.f32 %v518, %v750
    %v767 = vsub.f32 %v519, %v751
    %v768 = vsub.f32 %v520, %v752
    %v769 = vsub.f32 %v521, %v753
    %v770 = vsub.f32 %v522, %v754
    %v771 = vsub.f32 %v523, %v755
    %v772 = vsub.f32 %v524, %v756
    %v773 = vsub.f32 %v525, %v757
    %v774 = vsub.f32 %v526, %v758
    %775 = vmax.xlane.f32.xlu0 %v759
    %v776 = vpop.xlane.xlu0 %775
    %777 = vmax.xlane.f32.xlu0 %v760
    %v778 = vpop.xlane.xlu0 %777
    %779 = vmax.xlane.f32.xlu0 %v761
    %v780 = vpop.xlane.xlu0 %779
    %781 = vmax.xlane.f32.xlu0 %v762
    %v782 = vpop.xlane.xlu0 %781
    %783 = vmax.xlane.f32.xlu0 %v763
    %v784 = vpop.xlane.xlu0 %783
    %785 = vmax.xlane.f32.xlu0 %v764
    %v786 = vpop.xlane.xlu0 %785
    %787 = vmax.xlane.f32.xlu0 %v765
    %v788 = vpop.xlane.xlu0 %787
    %789 = vmax.xlane.f32.xlu0 %v766
    %v790 = vpop.xlane.xlu0 %789
    %791 = vmax.xlane.f32.xlu0 %v767
    %v792 = vpop.xlane.xlu0 %791
    %793 = vmax.xlane.f32.xlu0 %v768
    %v794 = vpop.xlane.xlu0 %793
    %795 = vmax.xlane.f32.xlu0 %v769
    %v796 = vpop.xlane.xlu0 %795
    %797 = vmax.xlane.f32.xlu0 %v770
    %v798 = vpop.xlane.xlu0 %797
    %799 = vmax.xlane.f32.xlu0 %v771
    %v800 = vpop.xlane.xlu0 %799
    %801 = vmax.xlane.f32.xlu0 %v772
    %v802 = vpop.xlane.xlu0 %801
    %803 = vmax.xlane.f32.xlu0 %v773
    %v804 = vpop.xlane.xlu0 %803
    %805 = vmax.xlane.f32.xlu0 %v774
    %v806 = vpop.xlane.xlu0 %805
    %v807 = vsub.f32 1.0, %v711
    %v808 = vsub.f32 1.0, %v712
    %v809 = vsub.f32 1.0, %v713
    %v810 = vsub.f32 1.0, %v714
    %v811 = vsub.f32 1.0, %v715
    %v812 = vsub.f32 1.0, %v716
    %v813 = vsub.f32 1.0, %v717
    %v814 = vsub.f32 1.0, %v718
    %v815 = vsub.f32 1.0, %v719
    %v816 = vsub.f32 1.0, %v720
    %v817 = vsub.f32 1.0, %v721
    %v818 = vsub.f32 1.0, %v722
    %v819 = vsub.f32 1.0, %v723
    %v820 = vsub.f32 1.0, %v724
    %v821 = vsub.f32 1.0, %v725
    %v822 = vsub.f32 1.0, %v726
    %v823 = vmul.f32 %v807, 1e+09
    %v824 = vmul.f32 %v808, 1e+09
    %v825 = vmul.f32 %v809, 1e+09
    %v826 = vmul.f32 %v810, 1e+09
    %v827 = vmul.f32 %v811, 1e+09
    %v828 = vmul.f32 %v812, 1e+09
    %v829 = vmul.f32 %v813, 1e+09
    %v830 = vmul.f32 %v814, 1e+09
    %v831 = vmul.f32 %v815, 1e+09
    %v832 = vmul.f32 %v816, 1e+09
    %v833 = vmul.f32 %v817, 1e+09
    %v834 = vmul.f32 %v818, 1e+09
    %v835 = vmul.f32 %v819, 1e+09
    %v836 = vmul.f32 %v820, 1e+09
    %v837 = vmul.f32 %v821, 1e+09
    %v838 = vmul.f32 %v822, 1e+09
    %v839 = vadd.f32 %v511, %v823
    %v840 = vadd.f32 %v512, %v824
    %v841 = vadd.f32 %v513, %v825
    %v842 = vadd.f32 %v514, %v826
    %v843 = vadd.f32 %v515, %v827
    %v844 = vadd.f32 %v516, %v828
    %v845 = vadd.f32 %v517, %v829
    %v846 = vadd.f32 %v518, %v830
    %v847 = vadd.f32 %v519, %v831
    %v848 = vadd.f32 %v520, %v832
    %v849 = vadd.f32 %v521, %v833
    %v850 = vadd.f32 %v522, %v834
    %v851 = vadd.f32 %v523, %v835
    %v852 = vadd.f32 %v524, %v836
    %v853 = vadd.f32 %v525, %v837
    %v854 = vadd.f32 %v526, %v838
    %855 = vmin.xlane.f32.xlu0 %v839
    %v856 = vpop.xlane.xlu0 %855
    %857 = vmin.xlane.f32.xlu0 %v840
    %v858 = vpop.xlane.xlu0 %857
    %859 = vmin.xlane.f32.xlu0 %v841
    %v860 = vpop.xlane.xlu0 %859
    %861 = vmin.xlane.f32.xlu0 %v842
    %v862 = vpop.xlane.xlu0 %861
    %863 = vmin.xlane.f32.xlu0 %v843
    %v864 = vpop.xlane.xlu0 %863
    %865 = vmin.xlane.f32.xlu0 %v844
    %v866 = vpop.xlane.xlu0 %865
    %867 = vmin.xlane.f32.xlu0 %v845
    %v868 = vpop.xlane.xlu0 %867
    %869 = vmin.xlane.f32.xlu0 %v846
    %v870 = vpop.xlane.xlu0 %869
    %871 = vmin.xlane.f32.xlu0 %v847
    %v872 = vpop.xlane.xlu0 %871
    %873 = vmin.xlane.f32.xlu0 %v848
    %v874 = vpop.xlane.xlu0 %873
    %875 = vmin.xlane.f32.xlu0 %v849
    %v876 = vpop.xlane.xlu0 %875
    %877 = vmin.xlane.f32.xlu0 %v850
    %v878 = vpop.xlane.xlu0 %877
    %879 = vmin.xlane.f32.xlu0 %v851
    %v880 = vpop.xlane.xlu0 %879
    %881 = vmin.xlane.f32.xlu0 %v852
    %v882 = vpop.xlane.xlu0 %881
    %883 = vmin.xlane.f32.xlu0 %v853
    %v884 = vpop.xlane.xlu0 %883
    %885 = vmin.xlane.f32.xlu0 %v854
    %v886 = vpop.xlane.xlu0 %885
    %v887 = vmax.f32 %v776, 1e-12
    %v888 = vmax.f32 %v778, 1e-12
    %v889 = vmax.f32 %v780, 1e-12
    %v890 = vmax.f32 %v782, 1e-12
    %v891 = vmax.f32 %v784, 1e-12
    %v892 = vmax.f32 %v786, 1e-12
    %v893 = vmax.f32 %v788, 1e-12
    %v894 = vmax.f32 %v790, 1e-12
    %v895 = vmax.f32 %v792, 1e-12
    %v896 = vmax.f32 %v794, 1e-12
    %v897 = vmax.f32 %v796, 1e-12
    %v898 = vmax.f32 %v798, 1e-12
    %v899 = vmax.f32 %v800, 1e-12
    %v900 = vmax.f32 %v802, 1e-12
    %v901 = vmax.f32 %v804, 1e-12
    %v902 = vmax.f32 %v806, 1e-12
    %v903 = vrsqrt.pop %v887
    %v904 = vmul.f32 %v887, %v903
    %vm905 = vcmp.eq.f32.partialorder %v887, inf
    %v906 = vsel %vm905, %v887, %v904
    %vm907 = vcmp.eq.f32.partialorder %v887, 0.0
    %v908 = vand.u32 %v887, 2147483648
    %v909 = vsel %vm907, %v908, %v906
    %v910 = vrsqrt.pop %v888
    %v911 = vmul.f32 %v888, %v910
    %vm912 = vcmp.eq.f32.partialorder %v888, inf
    %v913 = vsel %vm912, %v888, %v911
    %vm914 = vcmp.eq.f32.partialorder %v888, 0.0
    %v915 = vand.u32 %v888, 2147483648
    %v916 = vsel %vm914, %v915, %v913
    %v917 = vrsqrt.pop %v889
    %v918 = vmul.f32 %v889, %v917
    %vm919 = vcmp.eq.f32.partialorder %v889, inf
    %v920 = vsel %vm919, %v889, %v918
    %vm921 = vcmp.eq.f32.partialorder %v889, 0.0
    %v922 = vand.u32 %v889, 2147483648
    %v923 = vsel %vm921, %v922, %v920
    %v924 = vrsqrt.pop %v890
    %v925 = vmul.f32 %v890, %v924
    %vm926 = vcmp.eq.f32.partialorder %v890, inf
    %v927 = vsel %vm926, %v890, %v925
    %vm928 = vcmp.eq.f32.partialorder %v890, 0.0
    %v929 = vand.u32 %v890, 2147483648
    %v930 = vsel %vm928, %v929, %v927
    %v931 = vrsqrt.pop %v891
    %v932 = vmul.f32 %v891, %v931
    %vm933 = vcmp.eq.f32.partialorder %v891, inf
    %v934 = vsel %vm933, %v891, %v932
    %vm935 = vcmp.eq.f32.partialorder %v891, 0.0
    %v936 = vand.u32 %v891, 2147483648
    %v937 = vsel %vm935, %v936, %v934
    %v938 = vrsqrt.pop %v892
    %v939 = vmul.f32 %v892, %v938
    %vm940 = vcmp.eq.f32.partialorder %v892, inf
    %v941 = vsel %vm940, %v892, %v939
    %vm942 = vcmp.eq.f32.partialorder %v892, 0.0
    %v943 = vand.u32 %v892, 2147483648
    %v944 = vsel %vm942, %v943, %v941
    %v945 = vrsqrt.pop %v893
    %v946 = vmul.f32 %v893, %v945
    %vm947 = vcmp.eq.f32.partialorder %v893, inf
    %v948 = vsel %vm947, %v893, %v946
    %vm949 = vcmp.eq.f32.partialorder %v893, 0.0
    %v950 = vand.u32 %v893, 2147483648
    %v951 = vsel %vm949, %v950, %v948
    %v952 = vrsqrt.pop %v894
    %v953 = vmul.f32 %v894, %v952
    %vm954 = vcmp.eq.f32.partialorder %v894, inf
    %v955 = vsel %vm954, %v894, %v953
    %vm956 = vcmp.eq.f32.partialorder %v894, 0.0
    %v957 = vand.u32 %v894, 2147483648
    %v958 = vsel %vm956, %v957, %v955
    %v959 = vrsqrt.pop %v895
    %v960 = vmul.f32 %v895, %v959
    %vm961 = vcmp.eq.f32.partialorder %v895, inf
    %v962 = vsel %vm961, %v895, %v960
    %vm963 = vcmp.eq.f32.partialorder %v895, 0.0
    %v964 = vand.u32 %v895, 2147483648
    %v965 = vsel %vm963, %v964, %v962
    %v966 = vrsqrt.pop %v896
    %v967 = vmul.f32 %v896, %v966
    %vm968 = vcmp.eq.f32.partialorder %v896, inf
    %v969 = vsel %vm968, %v896, %v967
    %vm970 = vcmp.eq.f32.partialorder %v896, 0.0
    %v971 = vand.u32 %v896, 2147483648
    %v972 = vsel %vm970, %v971, %v969
    %v973 = vrsqrt.pop %v897
    %v974 = vmul.f32 %v897, %v973
    %vm975 = vcmp.eq.f32.partialorder %v897, inf
    %v976 = vsel %vm975, %v897, %v974
    %vm977 = vcmp.eq.f32.partialorder %v897, 0.0
    %v978 = vand.u32 %v897, 2147483648
    %v979 = vsel %vm977, %v978, %v976
    %v980 = vrsqrt.pop %v898
    %v981 = vmul.f32 %v898, %v980
    %vm982 = vcmp.eq.f32.partialorder %v898, inf
    %v983 = vsel %vm982, %v898, %v981
    %vm984 = vcmp.eq.f32.partialorder %v898, 0.0
    %v985 = vand.u32 %v898, 2147483648
    %v986 = vsel %vm984, %v985, %v983
    %v987 = vrsqrt.pop %v899
    %v988 = vmul.f32 %v899, %v987
    %vm989 = vcmp.eq.f32.partialorder %v899, inf
    %v990 = vsel %vm989, %v899, %v988
    %vm991 = vcmp.eq.f32.partialorder %v899, 0.0
    %v992 = vand.u32 %v899, 2147483648
    %v993 = vsel %vm991, %v992, %v990
    %v994 = vrsqrt.pop %v900
    %v995 = vmul.f32 %v900, %v994
    %vm996 = vcmp.eq.f32.partialorder %v900, inf
    %v997 = vsel %vm996, %v900, %v995
    %vm998 = vcmp.eq.f32.partialorder %v900, 0.0
    %v999 = vand.u32 %v900, 2147483648
    %v1000 = vsel %vm998, %v999, %v997
    %v1001 = vrsqrt.pop %v901
    %v1002 = vmul.f32 %v901, %v1001
    %vm1003 = vcmp.eq.f32.partialorder %v901, inf
    %v1004 = vsel %vm1003, %v901, %v1002
    %vm1005 = vcmp.eq.f32.partialorder %v901, 0.0
    %v1006 = vand.u32 %v901, 2147483648
    %v1007 = vsel %vm1005, %v1006, %v1004
    %v1008 = vrsqrt.pop %v902
    %v1009 = vmul.f32 %v902, %v1008
    %vm1010 = vcmp.eq.f32.partialorder %v902, inf
    %v1011 = vsel %vm1010, %v902, %v1009
    %vm1012 = vcmp.eq.f32.partialorder %v902, 0.0
    %v1013 = vand.u32 %v902, 2147483648
    %v1014 = vsel %vm1012, %v1013, %v1011
    %v1015 = vmax.f32 %v856, 1e-12
    %v1016 = vmax.f32 %v858, 1e-12
    %v1017 = vmax.f32 %v860, 1e-12
    %v1018 = vmax.f32 %v862, 1e-12
    %v1019 = vmax.f32 %v864, 1e-12
    %v1020 = vmax.f32 %v866, 1e-12
    %v1021 = vmax.f32 %v868, 1e-12
    %v1022 = vmax.f32 %v870, 1e-12
    %v1023 = vmax.f32 %v872, 1e-12
    %v1024 = vmax.f32 %v874, 1e-12
    %v1025 = vmax.f32 %v876, 1e-12
    %v1026 = vmax.f32 %v878, 1e-12
    %v1027 = vmax.f32 %v880, 1e-12
    %v1028 = vmax.f32 %v882, 1e-12
    %v1029 = vmax.f32 %v884, 1e-12
    %v1030 = vmax.f32 %v886, 1e-12
    %v1031 = vrsqrt.pop %v1015
    %v1032 = vmul.f32 %v1015, %v1031
    %vm1033 = vcmp.eq.f32.partialorder %v1015, inf
    %v1034 = vsel %vm1033, %v1015, %v1032
    %vm1035 = vcmp.eq.f32.partialorder %v1015, 0.0
    %v1036 = vand.u32 %v1015, 2147483648
    %v1037 = vsel %vm1035, %v1036, %v1034
    %v1038 = vrsqrt.pop %v1016
    %v1039 = vmul.f32 %v1016, %v1038
    %vm1040 = vcmp.eq.f32.partialorder %v1016, inf
    %v1041 = vsel %vm1040, %v1016, %v1039
    %vm1042 = vcmp.eq.f32.partialorder %v1016, 0.0
    %v1043 = vand.u32 %v1016, 2147483648
    %v1044 = vsel %vm1042, %v1043, %v1041
    %v1045 = vrsqrt.pop %v1017
    %v1046 = vmul.f32 %v1017, %v1045
    %vm1047 = vcmp.eq.f32.partialorder %v1017, inf
    %v1048 = vsel %vm1047, %v1017, %v1046
    %vm1049 = vcmp.eq.f32.partialorder %v1017, 0.0
    %v1050 = vand.u32 %v1017, 2147483648
    %v1051 = vsel %vm1049, %v1050, %v1048
    %v1052 = vrsqrt.pop %v1018
    %v1053 = vmul.f32 %v1018, %v1052
    %vm1054 = vcmp.eq.f32.partialorder %v1018, inf
    %v1055 = vsel %vm1054, %v1018, %v1053
    %vm1056 = vcmp.eq.f32.partialorder %v1018, 0.0
    %v1057 = vand.u32 %v1018, 2147483648
    %v1058 = vsel %vm1056, %v1057, %v1055
    %v1059 = vrsqrt.pop %v1019
    %v1060 = vmul.f32 %v1019, %v1059
    %vm1061 = vcmp.eq.f32.partialorder %v1019, inf
    %v1062 = vsel %vm1061, %v1019, %v1060
    %vm1063 = vcmp.eq.f32.partialorder %v1019, 0.0
    %v1064 = vand.u32 %v1019, 2147483648
    %v1065 = vsel %vm1063, %v1064, %v1062
    %v1066 = vrsqrt.pop %v1020
    %v1067 = vmul.f32 %v1020, %v1066
    %vm1068 = vcmp.eq.f32.partialorder %v1020, inf
    %v1069 = vsel %vm1068, %v1020, %v1067
    %vm1070 = vcmp.eq.f32.partialorder %v1020, 0.0
    %v1071 = vand.u32 %v1020, 2147483648
    %v1072 = vsel %vm1070, %v1071, %v1069
    %v1073 = vrsqrt.pop %v1021
    %v1074 = vmul.f32 %v1021, %v1073
    %vm1075 = vcmp.eq.f32.partialorder %v1021, inf
    %v1076 = vsel %vm1075, %v1021, %v1074
    %vm1077 = vcmp.eq.f32.partialorder %v1021, 0.0
    %v1078 = vand.u32 %v1021, 2147483648
    %v1079 = vsel %vm1077, %v1078, %v1076
    %v1080 = vrsqrt.pop %v1022
    %v1081 = vmul.f32 %v1022, %v1080
    %vm1082 = vcmp.eq.f32.partialorder %v1022, inf
    %v1083 = vsel %vm1082, %v1022, %v1081
    %vm1084 = vcmp.eq.f32.partialorder %v1022, 0.0
    %v1085 = vand.u32 %v1022, 2147483648
    %v1086 = vsel %vm1084, %v1085, %v1083
    %v1087 = vrsqrt.pop %v1023
    %v1088 = vmul.f32 %v1023, %v1087
    %vm1089 = vcmp.eq.f32.partialorder %v1023, inf
    %v1090 = vsel %vm1089, %v1023, %v1088
    %vm1091 = vcmp.eq.f32.partialorder %v1023, 0.0
    %v1092 = vand.u32 %v1023, 2147483648
    %v1093 = vsel %vm1091, %v1092, %v1090
    %v1094 = vrsqrt.pop %v1024
    %v1095 = vmul.f32 %v1024, %v1094
    %vm1096 = vcmp.eq.f32.partialorder %v1024, inf
    %v1097 = vsel %vm1096, %v1024, %v1095
    %vm1098 = vcmp.eq.f32.partialorder %v1024, 0.0
    %v1099 = vand.u32 %v1024, 2147483648
    %v1100 = vsel %vm1098, %v1099, %v1097
    %v1101 = vrsqrt.pop %v1025
    %v1102 = vmul.f32 %v1025, %v1101
    %vm1103 = vcmp.eq.f32.partialorder %v1025, inf
    %v1104 = vsel %vm1103, %v1025, %v1102
    %vm1105 = vcmp.eq.f32.partialorder %v1025, 0.0
    %v1106 = vand.u32 %v1025, 2147483648
    %v1107 = vsel %vm1105, %v1106, %v1104
    %v1108 = vrsqrt.pop %v1026
    %v1109 = vmul.f32 %v1026, %v1108
    %vm1110 = vcmp.eq.f32.partialorder %v1026, inf
    %v1111 = vsel %vm1110, %v1026, %v1109
    %vm1112 = vcmp.eq.f32.partialorder %v1026, 0.0
    %v1113 = vand.u32 %v1026, 2147483648
    %v1114 = vsel %vm1112, %v1113, %v1111
    %v1115 = vrsqrt.pop %v1027
    %v1116 = vmul.f32 %v1027, %v1115
    %vm1117 = vcmp.eq.f32.partialorder %v1027, inf
    %v1118 = vsel %vm1117, %v1027, %v1116
    %vm1119 = vcmp.eq.f32.partialorder %v1027, 0.0
    %v1120 = vand.u32 %v1027, 2147483648
    %v1121 = vsel %vm1119, %v1120, %v1118
    %v1122 = vrsqrt.pop %v1028
    %v1123 = vmul.f32 %v1028, %v1122
    %vm1124 = vcmp.eq.f32.partialorder %v1028, inf
    %v1125 = vsel %vm1124, %v1028, %v1123
    %vm1126 = vcmp.eq.f32.partialorder %v1028, 0.0
    %v1127 = vand.u32 %v1028, 2147483648
    %v1128 = vsel %vm1126, %v1127, %v1125
    %v1129 = vrsqrt.pop %v1029
    %v1130 = vmul.f32 %v1029, %v1129
    %vm1131 = vcmp.eq.f32.partialorder %v1029, inf
    %v1132 = vsel %vm1131, %v1029, %v1130
    %vm1133 = vcmp.eq.f32.partialorder %v1029, 0.0
    %v1134 = vand.u32 %v1029, 2147483648
    %v1135 = vsel %vm1133, %v1134, %v1132
    %v1136 = vrsqrt.pop %v1030
    %v1137 = vmul.f32 %v1030, %v1136
    %vm1138 = vcmp.eq.f32.partialorder %v1030, inf
    %v1139 = vsel %vm1138, %v1030, %v1137
    %vm1140 = vcmp.eq.f32.partialorder %v1030, 0.0
    %v1141 = vand.u32 %v1030, 2147483648
    %v1142 = vsel %vm1140, %v1141, %v1139
    %s1143 = smul.u32 0, 128
    %v1144 = vlaneseq
    %v1145 = vshrl.u32 %v1144, 7
    %v1146 = vadd.s32 %v1145, 8
    %v1147 = vadd.s32 %v1145, 16
    %v1148 = vadd.s32 %v1145, 24
    %v1149 = vadd.s32 %v1145, 32
    %v1150 = vadd.s32 %v1145, 40
    %v1151 = vadd.s32 %v1145, 48
    %v1152 = vadd.s32 %v1145, 56
    %v1153 = vadd.s32 %v1145, 64
    %v1154 = vadd.s32 %v1145, 72
    %v1155 = vadd.s32 %v1145, 80
    %v1156 = vadd.s32 %v1145, 88
    %v1157 = vadd.s32 %v1145, 96
    %v1158 = vadd.s32 %v1145, 104
    %v1159 = vadd.s32 %v1145, 112
    %v1160 = vadd.s32 %v1145, 120
    %v1161 = vstv %s1143
    %v1162 = vadd.s32 %v1161, %v1145
    %v1163 = vadd.s32 %v1161, %v1146
    %v1164 = vadd.s32 %v1161, %v1147
    %v1165 = vadd.s32 %v1161, %v1148
    %v1166 = vadd.s32 %v1161, %v1149
    %v1167 = vadd.s32 %v1161, %v1150
    %v1168 = vadd.s32 %v1161, %v1151
    %v1169 = vadd.s32 %v1161, %v1152
    %v1170 = vadd.s32 %v1161, %v1153
    %v1171 = vadd.s32 %v1161, %v1154
    %v1172 = vadd.s32 %v1161, %v1155
    %v1173 = vadd.s32 %v1161, %v1156
    %v1174 = vadd.s32 %v1161, %v1157
    %v1175 = vadd.s32 %v1161, %v1158
    %v1176 = vadd.s32 %v1161, %v1159
    %v1177 = vadd.s32 %v1161, %v1160
    %vm1178 = vcmp.lt.s32.totalorder %v1162, 8
    %vm1179 = vcmp.lt.s32.totalorder %v1163, 8
    %vm1180 = vcmp.lt.s32.totalorder %v1164, 8
    %vm1181 = vcmp.lt.s32.totalorder %v1165, 8
    %vm1182 = vcmp.lt.s32.totalorder %v1166, 8
    %vm1183 = vcmp.lt.s32.totalorder %v1167, 8
    %vm1184 = vcmp.lt.s32.totalorder %v1168, 8
    %vm1185 = vcmp.lt.s32.totalorder %v1169, 8
    %vm1186 = vcmp.lt.s32.totalorder %v1170, 8
    %vm1187 = vcmp.lt.s32.totalorder %v1171, 8
    %vm1188 = vcmp.lt.s32.totalorder %v1172, 8
    %vm1189 = vcmp.lt.s32.totalorder %v1173, 8
    %vm1190 = vcmp.lt.s32.totalorder %v1174, 8
    %vm1191 = vcmp.lt.s32.totalorder %v1175, 8
    %vm1192 = vcmp.lt.s32.totalorder %v1176, 8
    %vm1193 = vcmp.lt.s32.totalorder %v1177, 8
    %v1194 = vsel %vm1178, 1, 0
    %v1195 = vsel %vm1179, 1, 0
    %v1196 = vsel %vm1180, 1, 0
    %v1197 = vsel %vm1181, 1, 0
    %v1198 = vsel %vm1182, 1, 0
    %v1199 = vsel %vm1183, 1, 0
    %v1200 = vsel %vm1184, 1, 0
    %v1201 = vsel %vm1185, 1, 0
    %v1202 = vsel %vm1186, 1, 0
    %v1203 = vsel %vm1187, 1, 0
    %v1204 = vsel %vm1188, 1, 0
    %v1205 = vsel %vm1189, 1, 0
    %v1206 = vsel %vm1190, 1, 0
    %v1207 = vsel %vm1191, 1, 0
    %v1208 = vsel %vm1192, 1, 0
    %v1209 = vsel %vm1193, 1, 0
    %v1210 = vcvt.s32.f32 %v1194
    %v1211 = vcvt.s32.f32 %v1195
    %v1212 = vcvt.s32.f32 %v1196
    %v1213 = vcvt.s32.f32 %v1197
    %v1214 = vcvt.s32.f32 %v1198
    %v1215 = vcvt.s32.f32 %v1199
    %v1216 = vcvt.s32.f32 %v1200
    %v1217 = vcvt.s32.f32 %v1201
    %v1218 = vcvt.s32.f32 %v1202
    %v1219 = vcvt.s32.f32 %v1203
    %v1220 = vcvt.s32.f32 %v1204
    %v1221 = vcvt.s32.f32 %v1205
    %v1222 = vcvt.s32.f32 %v1206
    %v1223 = vcvt.s32.f32 %v1207
    %v1224 = vcvt.s32.f32 %v1208
    %v1225 = vcvt.s32.f32 %v1209
    %v1226 = vsub.f32 %v909, %v1037
    %v1227 = vsub.f32 %v916, %v1044
    %v1228 = vsub.f32 %v923, %v1051
    %v1229 = vsub.f32 %v930, %v1058
    %v1230 = vsub.f32 %v937, %v1065
    %v1231 = vsub.f32 %v944, %v1072
    %v1232 = vsub.f32 %v951, %v1079
    %v1233 = vsub.f32 %v958, %v1086
    %v1234 = vsub.f32 %v965, %v1093
    %v1235 = vsub.f32 %v972, %v1100
    %v1236 = vsub.f32 %v979, %v1107
    %v1237 = vsub.f32 %v986, %v1114
    %v1238 = vsub.f32 %v993, %v1121
    %v1239 = vsub.f32 %v1000, %v1128
    %v1240 = vsub.f32 %v1007, %v1135
    %v1241 = vsub.f32 %v1014, %v1142
    %v1242 = vadd.f32 %v1226, 0.3
    %v1243 = vadd.f32 %v1227, 0.3
    %v1244 = vadd.f32 %v1228, 0.3
    %v1245 = vadd.f32 %v1229, 0.3
    %v1246 = vadd.f32 %v1230, 0.3
    %v1247 = vadd.f32 %v1231, 0.3
    %v1248 = vadd.f32 %v1232, 0.3
    %v1249 = vadd.f32 %v1233, 0.3
    %v1250 = vadd.f32 %v1234, 0.3
    %v1251 = vadd.f32 %v1235, 0.3
    %v1252 = vadd.f32 %v1236, 0.3
    %v1253 = vadd.f32 %v1237, 0.3
    %v1254 = vadd.f32 %v1238, 0.3
    %v1255 = vadd.f32 %v1239, 0.3
    %v1256 = vadd.f32 %v1240, 0.3
    %v1257 = vadd.f32 %v1241, 0.3
    %v1258 = vmax.f32 %v1242, 0.0
    %v1259 = vmax.f32 %v1243, 0.0
    %v1260 = vmax.f32 %v1244, 0.0
    %v1261 = vmax.f32 %v1245, 0.0
    %v1262 = vmax.f32 %v1246, 0.0
    %v1263 = vmax.f32 %v1247, 0.0
    %v1264 = vmax.f32 %v1248, 0.0
    %v1265 = vmax.f32 %v1249, 0.0
    %v1266 = vmax.f32 %v1250, 0.0
    %v1267 = vmax.f32 %v1251, 0.0
    %v1268 = vmax.f32 %v1252, 0.0
    %v1269 = vmax.f32 %v1253, 0.0
    %v1270 = vmax.f32 %v1254, 0.0
    %v1271 = vmax.f32 %v1255, 0.0
    %v1272 = vmax.f32 %v1256, 0.0
    %v1273 = vmax.f32 %v1257, 0.0
    %v1274 = vmul.f32 %v1258, %v1210
    %v1275 = vmul.f32 %v1259, %v1211
    %v1276 = vmul.f32 %v1260, %v1212
    %v1277 = vmul.f32 %v1261, %v1213
    %v1278 = vmul.f32 %v1262, %v1214
    %v1279 = vmul.f32 %v1263, %v1215
    %v1280 = vmul.f32 %v1264, %v1216
    %v1281 = vmul.f32 %v1265, %v1217
    %v1282 = vmul.f32 %v1266, %v1218
    %v1283 = vmul.f32 %v1267, %v1219
    %v1284 = vmul.f32 %v1268, %v1220
    %v1285 = vmul.f32 %v1269, %v1221
    %v1286 = vmul.f32 %v1270, %v1222
    %v1287 = vmul.f32 %v1271, %v1223
    %v1288 = vmul.f32 %v1272, %v1224
    %v1289 = vmul.f32 %v1273, %v1225
    %vm1290 = vcmask 7168
    %1291 = vst.msk [vmem:[#allocation13] sm:$0xff] %vm1290, %v1274
    %1292 = vst.msk [vmem:[#allocation13 + $0x8] sm:$0xff] %vm1290, %v1275
    %1293 = vst.msk [vmem:[#allocation13 + $0x10] sm:$0xff] %vm1290, %v1276
    %1294 = vst.msk [vmem:[#allocation13 + $0x18] sm:$0xff] %vm1290, %v1277
    %1295 = vst.msk [vmem:[#allocation13 + $0x20] sm:$0xff] %vm1290, %v1278
    %1296 = vst.msk [vmem:[#allocation13 + $0x28] sm:$0xff] %vm1290, %v1279
    %1297 = vst.msk [vmem:[#allocation13 + $0x30] sm:$0xff] %vm1290, %v1280
    %1298 = vst.msk [vmem:[#allocation13 + $0x38] sm:$0xff] %vm1290, %v1281
    %1299 = vst.msk [vmem:[#allocation13 + $0x40] sm:$0xff] %vm1290, %v1282
    %1300 = vst.msk [vmem:[#allocation13 + $0x48] sm:$0xff] %vm1290, %v1283
    %1301 = vst.msk [vmem:[#allocation13 + $0x50] sm:$0xff] %vm1290, %v1284
    %1302 = vst.msk [vmem:[#allocation13 + $0x58] sm:$0xff] %vm1290, %v1285
    %1303 = vst.msk [vmem:[#allocation13 + $0x60] sm:$0xff] %vm1290, %v1286
    %1304 = vst.msk [vmem:[#allocation13 + $0x68] sm:$0xff] %vm1290, %v1287
    %1305 = vst.msk [vmem:[#allocation13 + $0x70] sm:$0xff] %vm1290, %v1288
    %1306 = vst.msk [vmem:[#allocation13 + $0x78] sm:$0xff] %vm1290, %v1289
    // Predicated region
    $region50: #{tpu_custom_call.1} parent=1 // pred_check
      _
    $region51: #{tpu_custom_call.1} parent=1 // pred_check_branch
      %1308 = sbr.rel (0) target = $region53
    $region52: #{tpu_custom_call.1} parent=1 // pred_region
      %s1310 = ssub.s32 2048, 2048
      %1311 = vsyncadd [#allocation4], %s1310
      %s1312 = sshll.u32 [#allocation13], 4
      %s1313 = int_to_ptr.vmem [resolvable:$true] %s1312
      %1318 = dma.vmem_to_hbm [thread:$0]  %s1313, 2048, %s6, [#allocation4], 128, 128, 8
    $region53: #{tpu_custom_call.1} parent=1 // pred_fallthru
      _
    // Predicated region
    $region54: #{tpu_custom_call.1} parent=1 // pred_check
      _
    $region55: #{tpu_custom_call.1} parent=1 // pred_check_branch
      %1320 = sbr.rel (0) target = $region57
    $region56: #{tpu_custom_call.1} parent=1 // pred_region
      %1321 = dma.done [#allocation4], 2048
    $region57: #{tpu_custom_call.1} parent=1 // pred_fallthru
      _
    %1322 = vsyncpa [#allocation3], 1
    %1323 = vsyncpa [#allocation6], 1
    %1324 = vsyncpa [#allocation9], 1
    %1325 = vsyncpa [#allocation12], 1
    %1326 = vsyncpa [#allocation4], 1

</llo_original>
